<compile_context>
chip_gen: v5e
topology: v5e:2x2
jax: 0.10.0
libtpu: 0.0.40
codegen_flags: <defaults>
</compile_context>

<pallas_src>
import functools

import jax
import jax.numpy as jnp
from jax.experimental import pallas as pl
from jax.experimental.pallas import tpu as pltpu

NEG_SLOPE = 0.01  # default negative_slope of nn.LeakyReLU
D_IN, D_H1, D_H2, D_OUT = 200, 512, 256, 128


def _leaky_relu(x):
    # maximum-form: mul + max (2 VPU ops/elem) instead of cmp + mul + select.
    return jnp.maximum(x, NEG_SLOPE * x)


def mlp_kernel(x_ref, w1_ref, b1_ref, w2_ref, b2_ref, w3_ref, b3_ref, o_ref):
    # In-kernel bf16 cast of the streamed f32 x tile (VPU slack makes this free and
    # avoids a wrapper-side cast+pad HBM round trip).
    x = x_ref[...].astype(jnp.bfloat16)

    # Layer 1: (TM,200)bf16 @ (200,512)bf16 -> f32 acc, + b1 (f32), LeakyReLU in bf16.
    h = jnp.dot(x, w1_ref[...], preferred_element_type=jnp.float32) + b1_ref[...]
    h = h.astype(jnp.bfloat16)
    h = _leaky_relu(h)

    # Layer 2: (TM,512) @ (512,256)
    h = jnp.dot(h, w2_ref[...], preferred_element_type=jnp.float32) + b2_ref[...]
    h = h.astype(jnp.bfloat16)
    h = _leaky_relu(h)

    # Layer 3: (TM,256) @ (256,128); final bias + LeakyReLU in f32, stored as f32.
    h = jnp.dot(h, w3_ref[...], preferred_element_type=jnp.float32) + b3_ref[...]
    o_ref[...] = _leaky_relu(h).astype(o_ref.dtype)


def _round_up(n, m):
    return ((n + m - 1) // m) * m


@functools.partial(jax.jit, static_argnames=("tm",))
def mlp_200(x, params, *, tm=2048):
    """x: (B, 200) float32. params: prepared params (bf16 weights stored (in,out), f32 biases)."""
    B = x.shape[0]

    w1, w2, w3 = params["w1"], params["w2"], params["w3"]   # bf16, prepped once
    b1, b2, b3 = params["b1"], params["b2"], params["b3"]   # f32, added post-accumulate

    # ---- batch tiling ----
    # Round batch up to the 8-sublane granule, then pick a row tile that gives at
    # least 2 grid steps whenever possible (so the "parallel" axis spans both v7x
    # TensorCores and DMA/compute pipelining has something to overlap).
    b8 = max(8, _round_up(B, 8))
    tm_eff = max(8, min(tm, _round_up(-(-b8 // 2), 8)))
    Bp = _round_up(b8, tm_eff)
    if Bp != B:
        x = jnp.pad(x, ((0, Bp - B), (0, 0)))
    n_tiles = Bp // tm_eff

    # Weights/biases: full-array blocks with a constant block index -> resident in
    # VMEM across grid steps (fetched once, not re-DMA'd per batch tile).
    full = lambda shape: pl.BlockSpec(shape, lambda i: tuple(0 for _ in shape))

    out = pl.pallas_call(
        mlp_kernel,
        out_shape=jax.ShapeDtypeStruct((Bp, D_OUT), jnp.float32),
        grid=(n_tiles,),
        in_specs=[
            # x streamed per batch tile as raw f32; last dim 200 == full array dim,
            # so the non-multiple-of-128 block is legal.
            pl.BlockSpec((tm_eff, D_IN), lambda i: (i, 0)),
            full((D_IN, D_H1)), full((1, D_H1)),
            full((D_H1, D_H2)), full((1, D_H2)),
            full((D_H2, D_OUT)), full((1, D_OUT)),
        ],
        out_specs=pl.BlockSpec((tm_eff, D_OUT), lambda i: (i, 0)),
        compiler_params=pltpu.CompilerParams(
            dimension_semantics=("parallel",),   # shard batch tiles across TCs (v7x)
            vmem_limit_bytes=24 << 20,           # ~0.6 MiB weights + tiles/intermediates
        ),
    )(x, w1, b1, w2, b2, w3, b3)

    return out[:B]


def init_params(key):
    """Deterministic init mimicking nn.Linear (uniform(-1/sqrt(fan_in), 1/sqrt(fan_in)))."""
    dims = [(D_IN, D_H1), (D_H1, D_H2), (D_H2, D_OUT)]
    params = {}
    for i, (fan_in, fan_out) in enumerate(dims, start=1):
        key, kw, kb = jax.random.split(key, 3)
        bound = 1.0 / jnp.sqrt(float(fan_in))
        # Stored as (in, out) = W.T relative to PyTorch's (out, in); same math.
        params[f"w{i}"] = jax.random.uniform(
            kw, (fan_in, fan_out), jnp.float32, minval=-bound, maxval=bound
        )
        params[f"b{i}"] = jax.random.uniform(
            kb, (1, fan_out), jnp.float32, minval=-bound, maxval=bound
        )
    return params


def prepare_params(params):
    """One-time param prep (hoisted out of the per-call path): bf16 weight cast."""
    return {
        "w1": params["w1"].astype(jnp.bfloat16),
        "w2": params["w2"].astype(jnp.bfloat16),
        "w3": params["w3"].astype(jnp.bfloat16),
        "b1": params["b1"].astype(jnp.float32),
        "b2": params["b2"].astype(jnp.float32),
        "b3": params["b3"].astype(jnp.float32),
    }


def mlp_200_ref(x, params):
    """Pure-JAX reference mirroring the kernel's bf16-operand / f32-accumulate math."""
    h = x.astype(jnp.bfloat16)
    for i in (1, 2):
        w = params[f"w{i}"].astype(jnp.bfloat16)
        h = jnp.dot(h, w, preferred_element_type=jnp.float32) + params[f"b{i}"]
        h = h.astype(jnp.bfloat16)
        h = jnp.maximum(h, NEG_SLOPE * h)
    w = params["w3"].astype(jnp.bfloat16)
    h = jnp.dot(h, w, preferred_element_type=jnp.float32) + params["b3"]
    return jnp.maximum(h, NEG_SLOPE * h)


if __name__ == "__main__":
    key = jax.random.PRNGKey(0)
    key, kx = jax.random.split(key)
    params = init_params(key)
    prepped = prepare_params(params)

    B = 8
    x = jax.random.normal(kx, (B, D_IN), dtype=jnp.float32)

    out = mlp_200(x, prepped)
    out = jax.block_until_ready(out)

    ref = mlp_200_ref(x, params)
    assert out.shape == (B, D_OUT), out.shape
    assert jnp.allclose(out, ref, atol=1e-2, rtol=1e-2), float(jnp.max(jnp.abs(out - ref)))

    print("KERNEL_OK")
</pallas_src>

<mosaic_0001>
module attributes {stable_mosaic.version = 11 : i64} {
  func.func @mlp_kernel(%arg0: i32, %arg1: memref<8x200xf32, #tpu.memory_space<vmem>>, %arg2: memref<200x512xbf16, #tpu.memory_space<vmem>>, %arg3: memref<1x512xf32, #tpu.memory_space<vmem>>, %arg4: memref<512x256xbf16, #tpu.memory_space<vmem>>, %arg5: memref<1x256xf32, #tpu.memory_space<vmem>>, %arg6: memref<256x128xbf16, #tpu.memory_space<vmem>>, %arg7: memref<1x128xf32, #tpu.memory_space<vmem>>, %arg8: memref<8x128xf32, #tpu.memory_space<vmem>>) attributes {dimension_semantics = [#tpu.dimension_semantics<parallel>], iteration_bounds = array<i64: 1>, scalar_prefetch = 0 : i64, scratch_operands = 0 : i64, tpu.core_type = #tpu.core_type<tc>, window_params = [{transform_indices = @transform_0, window_bounds = array<i64: 8, 200>}, {pipeline_mode = #tpu.pipeline_mode<synchronous>, transform_indices = @transform_1, window_bounds = array<i64: 200, 512>}, {pipeline_mode = #tpu.pipeline_mode<synchronous>, transform_indices = @transform_2, window_bounds = array<i64: 1, 512>}, {pipeline_mode = #tpu.pipeline_mode<synchronous>, transform_indices = @transform_3, window_bounds = array<i64: 512, 256>}, {pipeline_mode = #tpu.pipeline_mode<synchronous>, transform_indices = @transform_4, window_bounds = array<i64: 1, 256>}, {pipeline_mode = #tpu.pipeline_mode<synchronous>, transform_indices = @transform_5, window_bounds = array<i64: 256, 128>}, {pipeline_mode = #tpu.pipeline_mode<synchronous>, transform_indices = @transform_6, window_bounds = array<i64: 1, 128>}, {transform_indices = @transform_7, window_bounds = array<i64: 8, 128>}]} {
    %c0 = arith.constant 0 : index
    %c0_0 = arith.constant 0 : index
    %0 = vector.load %arg1[%c0, %c0_0] : memref<8x200xf32, #tpu.memory_space<vmem>>, vector<8x200xf32>
    %1 = arith.truncf %0 : vector<8x200xf32> to vector<8x200xbf16>
    %c0_1 = arith.constant 0 : index
    %c0_2 = arith.constant 0 : index
    %2 = vector.load %arg2[%c0_1, %c0_2] : memref<200x512xbf16, #tpu.memory_space<vmem>>, vector<200x512xbf16>
    %cst = arith.constant dense<0.000000e+00> : vector<8x512xf32>
    %3 = tpu.matmul %1, %2, %cst {dimension_numbers = #tpu.dot_dimension_numbers<[1], [0], [0], [1], [0, 0, 1, 1], [], []>} : vector<8x200xbf16>, vector<200x512xbf16>, vector<8x512xf32> -> vector<8x512xf32>
    %c0_3 = arith.constant 0 : index
    %c0_4 = arith.constant 0 : index
    %4 = vector.load %arg3[%c0_3, %c0_4] : memref<1x512xf32, #tpu.memory_space<vmem>>, vector<1x512xf32>
    %5 = vector.broadcast %4 : vector<1x512xf32> to vector<8x512xf32>
    %6 = arith.addf %3, %5 : vector<8x512xf32>
    %7 = arith.truncf %6 : vector<8x512xf32> to vector<8x512xbf16>
    %cst_5 = arith.constant 1.000980e-02 : bf16
    %8 = vector.broadcast %cst_5 : bf16 to vector<8x512xbf16>
    %9 = arith.mulf %8, %7 : vector<8x512xbf16>
    %10 = arith.maximumf %7, %9 : vector<8x512xbf16>
    %c0_6 = arith.constant 0 : index
    %c0_7 = arith.constant 0 : index
    %11 = vector.load %arg4[%c0_6, %c0_7] : memref<512x256xbf16, #tpu.memory_space<vmem>>, vector<512x256xbf16>
    %cst_8 = arith.constant dense<0.000000e+00> : vector<8x256xf32>
    %12 = tpu.matmul %10, %11, %cst_8 {dimension_numbers = #tpu.dot_dimension_numbers<[1], [0], [0], [1], [0, 0, 1, 1], [], []>} : vector<8x512xbf16>, vector<512x256xbf16>, vector<8x256xf32> -> vector<8x256xf32>
    %c0_9 = arith.constant 0 : index
    %c0_10 = arith.constant 0 : index
    %13 = vector.load %arg5[%c0_9, %c0_10] : memref<1x256xf32, #tpu.memory_space<vmem>>, vector<1x256xf32>
    %14 = vector.broadcast %13 : vector<1x256xf32> to vector<8x256xf32>
    %15 = arith.addf %12, %14 : vector<8x256xf32>
    %16 = arith.truncf %15 : vector<8x256xf32> to vector<8x256xbf16>
    %cst_11 = arith.constant 1.000980e-02 : bf16
    %17 = vector.broadcast %cst_11 : bf16 to vector<8x256xbf16>
    %18 = arith.mulf %17, %16 : vector<8x256xbf16>
    %19 = arith.maximumf %16, %18 : vector<8x256xbf16>
    %c0_12 = arith.constant 0 : index
    %c0_13 = arith.constant 0 : index
    %20 = vector.load %arg6[%c0_12, %c0_13] : memref<256x128xbf16, #tpu.memory_space<vmem>>, vector<256x128xbf16>
    %cst_14 = arith.constant dense<0.000000e+00> : vector<8x128xf32>
    %21 = tpu.matmul %19, %20, %cst_14 {dimension_numbers = #tpu.dot_dimension_numbers<[1], [0], [0], [1], [0, 0, 1, 1], [], []>} : vector<8x256xbf16>, vector<256x128xbf16>, vector<8x128xf32> -> vector<8x128xf32>
    %c0_15 = arith.constant 0 : index
    %c0_16 = arith.constant 0 : index
    %22 = vector.load %arg7[%c0_15, %c0_16] : memref<1x128xf32, #tpu.memory_space<vmem>>, vector<1x128xf32>
    %23 = vector.broadcast %22 : vector<1x128xf32> to vector<8x128xf32>
    %24 = arith.addf %21, %23 : vector<8x128xf32>
    %cst_17 = arith.constant 0.00999999977 : f32
    %25 = vector.broadcast %cst_17 : f32 to vector<8x128xf32>
    %26 = arith.mulf %25, %24 : vector<8x128xf32>
    %27 = arith.maximumf %24, %26 : vector<8x128xf32>
    %c0_18 = arith.constant 0 : index
    %c0_19 = arith.constant 0 : index
    %28 = vector.load %arg8[%c0_18, %c0_19] : memref<8x128xf32, #tpu.memory_space<vmem>>, vector<8x128xf32>
    tpu.vector_store %arg8[%c0_18, %c0_19], %27 {strides = array<i32>} : memref<8x128xf32, #tpu.memory_space<vmem>>, vector<8x128xf32>,
    return
  }
  func.func @transform_0(%arg0: i32) -> (i32, i32) {
    %c0_i32 = arith.constant 0 : i32
    %c0_i32_0 = arith.constant 0 : i32
    return %arg0, %c0_i32 : i32, i32
  }
  func.func @transform_1(%arg0: i32) -> (i32, i32) {
    %c0_i32 = arith.constant 0 : i32
    %c0_i32_0 = arith.constant 0 : i32
    %c0_i32_1 = arith.constant 0 : i32
    return %c0_i32, %c0_i32_0 : i32, i32
  }
  func.func @transform_2(%arg0: i32) -> (i32, i32) {
    %c0_i32 = arith.constant 0 : i32
    %c0_i32_0 = arith.constant 0 : i32
    %c0_i32_1 = arith.constant 0 : i32
    return %c0_i32, %c0_i32_0 : i32, i32
  }
  func.func @transform_3(%arg0: i32) -> (i32, i32) {
    %c0_i32 = arith.constant 0 : i32
    %c0_i32_0 = arith.constant 0 : i32
    %c0_i32_1 = arith.constant 0 : i32
    return %c0_i32, %c0_i32_0 : i32, i32
  }
  func.func @transform_4(%arg0: i32) -> (i32, i32) {
    %c0_i32 = arith.constant 0 : i32
    %c0_i32_0 = arith.constant 0 : i32
    %c0_i32_1 = arith.constant 0 : i32
    return %c0_i32, %c0_i32_0 : i32, i32
  }
  func.func @transform_5(%arg0: i32) -> (i32, i32) {
    %c0_i32 = arith.constant 0 : i32
    %c0_i32_0 = arith.constant 0 : i32
    %c0_i32_1 = arith.constant 0 : i32
    return %c0_i32, %c0_i32_0 : i32, i32
  }
  func.func @transform_6(%arg0: i32) -> (i32, i32) {
    %c0_i32 = arith.constant 0 : i32
    %c0_i32_0 = arith.constant 0 : i32
    %c0_i32_1 = arith.constant 0 : i32
    return %c0_i32, %c0_i32_0 : i32, i32
  }
  func.func @transform_7(%arg0: i32) -> (i32, i32) {
    %c0_i32 = arith.constant 0 : i32
    %c0_i32_0 = arith.constant 0 : i32
    return %arg0, %c0_i32 : i32, i32
  }
}

</mosaic_0001>

<llo_original>
// kernel: mlp_200.1
$region0: #{mlp_200.1}
  #allocation0 [shape = 'u32[]', space=smem, size = 0x4, offset = 0x4, fixed_abs, tag = 'smem constant byte address 0x4 - core index']
  #allocation1 [shape = 'u32[72,128]{1,0:T(1,128)}', space=vmem, size = 0x9000, scoped, tag = 'internal scratch']
  %s0 = inlined_call_operand.hbm [shape: f32[8,200], index: 0, kind: input, shape index: {}]
  %s1 = inlined_call_operand.hbm [shape: bf16[200,512], index: 1, kind: input, shape index: {}]
  %s2 = inlined_call_operand.hbm [shape: f32[1,512], index: 2, kind: input, shape index: {}]
  %s3 = inlined_call_operand.hbm [shape: bf16[512,256], index: 3, kind: input, shape index: {}]
  %s4 = inlined_call_operand.hbm [shape: f32[1,256], index: 4, kind: input, shape index: {}]
  %s5 = inlined_call_operand.hbm [shape: bf16[256,128], index: 5, kind: input, shape index: {}]
  %s6 = inlined_call_operand.vmem [shape: f32[1,128], index: 6, kind: input, shape index: {}]
  %s7 = inlined_call_operand.hbm [shape: f32[8,128], index: 7, kind: output, shape index: {}]
  %s8 = sld [smem:[#allocation0]]
  $region62: #{mlp_200.1} parent=0
    _
  %s10 = ssub.s32 1, %s8
  %s11 = scalar_select 0, %s10, %s8
  $region1: #{mlp_200.1} parent=0
    #allocation2 [shape = 'u8[8192]{0}', space=vmem, size = 0x2000, scoped, tag = 'input window, operand 0, single buffered']
    #allocation3 [shape = 's32[1]{0}', space=sflag, size = 0x4, scoped, tag = 'scoped memory for mlp_200.1']
    #allocation4 [shape = 's32[1]{0}', space=sflag, size = 0x4, scoped, tag = 'scoped memory for mlp_200.1']
    #allocation5 [shape = 'u8[204800]{0}', space=vmem, size = 0x32000, scoped, tag = 'input window, operand 1, single buffered']
    #allocation6 [shape = 's32[1]{0}', space=sflag, size = 0x4, scoped, tag = 'scoped memory for mlp_200.1']
    #allocation7 [shape = 'u8[2048]{0}', space=vmem, size = 0x800, scoped, tag = 'input window, operand 2, single buffered']
    #allocation8 [shape = 'u8[262144]{0}', space=vmem, size = 0x40000, scoped, tag = 'input window, operand 3, single buffered']
    #allocation9 [shape = 's32[1]{0}', space=sflag, size = 0x4, scoped, tag = 'scoped memory for mlp_200.1']
    #allocation10 [shape = 'u8[1024]{0}', space=vmem, size = 0x400, scoped, tag = 'input window, operand 4, single buffered']
    #allocation11 [shape = 'u8[65536]{0}', space=vmem, size = 0x10000, scoped, tag = 'input window, operand 5, single buffered']
    #allocation12 [shape = 's32[1]{0}', space=sflag, size = 0x4, scoped, tag = 'scoped memory for mlp_200.1']
    #allocation13 [shape = 'u8[4096]{0}', space=vmem, size = 0x1000, scoped, tag = 'output window, operand 0, single buffered']
    %12 = vsyncpa [#allocation3], 0
    %13 = vsyncpa [#allocation6], 0
    %14 = vsyncpa [#allocation9], 0
    %15 = vsyncpa [#allocation12], 0
    %16 = vsyncpa [#allocation4], 0
    // Predicated region
    $region2: #{mlp_200.1} parent=1 // pred_check
      _
    $region3: #{mlp_200.1} parent=1 // pred_check_branch
      %18 = sbr.rel (0) target = $region5
    $region4: #{mlp_200.1} parent=1 // pred_region
      %20 = vsyncadd [#allocation3], 0
      %s22 = sshll.u32 %s0, 4
      %s23 = int_to_ptr.hbm [resolvable:$true] %s22
      %s24 = sshll.u32 [#allocation2], 4
      %s25 = int_to_ptr.vmem [resolvable:$true] %s24
      %27 = dma.hbm_to_vmem [thread:$0]  %s23, 256, %s25, [#allocation3]
    $region5: #{mlp_200.1} parent=1 // pred_fallthru
      _
    // Predicated region
    $region6: #{mlp_200.1} parent=1 // pred_check
      _
    $region7: #{mlp_200.1} parent=1 // pred_check_branch
      %29 = sbr.rel (0) target = $region9
    $region8: #{mlp_200.1} parent=1 // pred_region
      %31 = vsyncadd [#allocation6], 0
      %s32 = sshll.u32 %s1, 4
      %s33 = int_to_ptr.hbm [resolvable:$true] %s32
      %s34 = sshll.u32 [#allocation5], 4
      %s35 = int_to_ptr.vmem [resolvable:$true] %s34
      %40 = dma.hbm_to_vmem [thread:$0]  %s33, 6400, %s35, [#allocation6], 256, 256, 16
    $region9: #{mlp_200.1} parent=1 // pred_fallthru
      _
    // Predicated region
    $region10: #{mlp_200.1} parent=1 // pred_check
      _
    $region11: #{mlp_200.1} parent=1 // pred_check_branch
      %42 = sbr.rel (0) target = $region13
    $region12: #{mlp_200.1} parent=1 // pred_region
      %44 = vsyncadd [#allocation6], 0
      %s46 = sshll.u32 %s2, 4
      %s47 = int_to_ptr.hbm [resolvable:$true] %s46
      %s48 = sshll.u32 [#allocation7], 4
      %s49 = int_to_ptr.vmem [resolvable:$true] %s48
      %51 = dma.hbm_to_vmem [thread:$0]  %s47, 64, %s49, [#allocation6]
    $region13: #{mlp_200.1} parent=1 // pred_fallthru
      _
    // Predicated region
    $region14: #{mlp_200.1} parent=1 // pred_check
      _
    $region15: #{mlp_200.1} parent=1 // pred_check_branch
      %53 = sbr.rel (0) target = $region17
    $region16: #{mlp_200.1} parent=1 // pred_region
      %55 = vsyncadd [#allocation9], 0
      %s56 = sshll.u32 %s3, 4
      %s57 = int_to_ptr.hbm [resolvable:$true] %s56
      %s58 = sshll.u32 [#allocation8], 4
      %s59 = int_to_ptr.vmem [resolvable:$true] %s58
      %64 = dma.hbm_to_vmem [thread:$0]  %s57, 8192, %s59, [#allocation9], 128, 128, 8
    $region17: #{mlp_200.1} parent=1 // pred_fallthru
      _
    // Predicated region
    $region18: #{mlp_200.1} parent=1 // pred_check
      _
    $region19: #{mlp_200.1} parent=1 // pred_check_branch
      %66 = sbr.rel (0) target = $region21
    $region20: #{mlp_200.1} parent=1 // pred_region
      %68 = vsyncadd [#allocation9], 0
      %s70 = sshll.u32 %s4, 4
      %s71 = int_to_ptr.hbm [resolvable:$true] %s70
      %s72 = sshll.u32 [#allocation10], 4
      %s73 = int_to_ptr.vmem [resolvable:$true] %s72
      %75 = dma.hbm_to_vmem [thread:$0]  %s71, 32, %s73, [#allocation9]
    $region21: #{mlp_200.1} parent=1 // pred_fallthru
      _
    // Predicated region
    $region22: #{mlp_200.1} parent=1 // pred_check
      _
    $region23: #{mlp_200.1} parent=1 // pred_check_branch
      %77 = sbr.rel (0) target = $region25
    $region24: #{mlp_200.1} parent=1 // pred_region
      %79 = vsyncadd [#allocation12], 0
      %s80 = sshll.u32 %s5, 4
      %s81 = int_to_ptr.hbm [resolvable:$true] %s80
      %s82 = sshll.u32 [#allocation11], 4
      %s83 = int_to_ptr.vmem [resolvable:$true] %s82
      %88 = dma.hbm_to_vmem [thread:$0]  %s81, 2048, %s83, [#allocation12], 64, 64, 4
    $region25: #{mlp_200.1} parent=1 // pred_fallthru
      _
    // Predicated region
    $region26: #{mlp_200.1} parent=1 // pred_check
      _
    $region27: #{mlp_200.1} parent=1 // pred_check_branch
      %90 = sbr.rel (0) target = $region29
    $region28: #{mlp_200.1} parent=1 // pred_region
      _
    $region29: #{mlp_200.1} parent=1 // pred_fallthru
      _
    // Predicated region
    $region30: #{mlp_200.1} parent=1 // pred_check
      _
    $region31: #{mlp_200.1} parent=1 // pred_check_branch
      %92 = sbr.rel (0) target = $region33
    $region32: #{mlp_200.1} parent=1 // pred_region
      %94 = dma.done [#allocation3], 256
    $region33: #{mlp_200.1} parent=1 // pred_fallthru
      _
    // Predicated region
    $region34: #{mlp_200.1} parent=1 // pred_check
      _
    $region35: #{mlp_200.1} parent=1 // pred_check_branch
      %96 = sbr.rel (0) target = $region37
    $region36: #{mlp_200.1} parent=1 // pred_region
      %98 = dma.done [#allocation6], 6400
    $region37: #{mlp_200.1} parent=1 // pred_fallthru
      _
    // Predicated region
    $region38: #{mlp_200.1} parent=1 // pred_check
      _
    $region39: #{mlp_200.1} parent=1 // pred_check_branch
      %100 = sbr.rel (0) target = $region41
    $region40: #{mlp_200.1} parent=1 // pred_region
      %102 = dma.done [#allocation6], 64
    $region41: #{mlp_200.1} parent=1 // pred_fallthru
      _
    // Predicated region
    $region42: #{mlp_200.1} parent=1 // pred_check
      _
    $region43: #{mlp_200.1} parent=1 // pred_check_branch
      %104 = sbr.rel (0) target = $region45
    $region44: #{mlp_200.1} parent=1 // pred_region
      %106 = dma.done [#allocation9], 8192
    $region45: #{mlp_200.1} parent=1 // pred_fallthru
      _
    // Predicated region
    $region46: #{mlp_200.1} parent=1 // pred_check
      _
    $region47: #{mlp_200.1} parent=1 // pred_check_branch
      %108 = sbr.rel (0) target = $region49
    $region48: #{mlp_200.1} parent=1 // pred_region
      %110 = dma.done [#allocation9], 32
    $region49: #{mlp_200.1} parent=1 // pred_fallthru
      _
    // Predicated region
    $region50: #{mlp_200.1} parent=1 // pred_check
      _
    $region51: #{mlp_200.1} parent=1 // pred_check_branch
      %112 = sbr.rel (0) target = $region53
    $region52: #{mlp_200.1} parent=1 // pred_region
      %114 = dma.done [#allocation12], 2048
    $region53: #{mlp_200.1} parent=1 // pred_fallthru
      _
    %v116 = vld [vmem:[#allocation2] sm:$0xff]
    %v117 = vld [vmem:[#allocation2 + $0x8] sm:$0xff]
    %v118 = vpack.c.bf16 %v116, %v116
    %v119 = vpack.c.bf16 %v117, %v117
    %v120 = vld [vmem:[#allocation5] sm:$0xff]
    %v121 = vld [vmem:[#allocation5 + $0x8] sm:$0xff]
    %v122 = vld [vmem:[#allocation5 + $0x10] sm:$0xff]
    %v123 = vld [vmem:[#allocation5 + $0x18] sm:$0xff]
    %v124 = vld [vmem:[#allocation5 + $0x20] sm:$0xff]
    %v125 = vld [vmem:[#allocation5 + $0x28] sm:$0xff]
    %v126 = vld [vmem:[#allocation5 + $0x30] sm:$0xff]
    %v127 = vld [vmem:[#allocation5 + $0x38] sm:$0xff]
    %v128 = vld [vmem:[#allocation5 + $0x40] sm:$0xff]
    %v129 = vld [vmem:[#allocation5 + $0x48] sm:$0xff]
    %v130 = vld [vmem:[#allocation5 + $0x50] sm:$0xff]
    %v131 = vld [vmem:[#allocation5 + $0x58] sm:$0xff]
    %v132 = vld [vmem:[#allocation5 + $0x60] sm:$0xff]
    %v133 = vld [vmem:[#allocation5 + $0x68] sm:$0xff]
    %v134 = vld [vmem:[#allocation5 + $0x70] sm:$0xff]
    %v135 = vld [vmem:[#allocation5 + $0x78] sm:$0xff]
    %v136 = vld [vmem:[#allocation5 + $0x80] sm:$0xff]
    %v137 = vld [vmem:[#allocation5 + $0x88] sm:$0xff]
    %v138 = vld [vmem:[#allocation5 + $0x90] sm:$0xff]
    %v139 = vld [vmem:[#allocation5 + $0x98] sm:$0xff]
    %v140 = vld [vmem:[#allocation5 + $0xa0] sm:$0xff]
    %v141 = vld [vmem:[#allocation5 + $0xa8] sm:$0xff]
    %v142 = vld [vmem:[#allocation5 + $0xb0] sm:$0xff]
    %v143 = vld [vmem:[#allocation5 + $0xb8] sm:$0xff]
    %v144 = vld [vmem:[#allocation5 + $0xc0] sm:$0xff]
    %v145 = vld [vmem:[#allocation5 + $0xc8] sm:$0xff]
    %v146 = vld [vmem:[#allocation5 + $0xd0] sm:$0xff]
    %v147 = vld [vmem:[#allocation5 + $0xd8] sm:$0xff]
    %v148 = vld [vmem:[#allocation5 + $0xe0] sm:$0xff]
    %v149 = vld [vmem:[#allocation5 + $0xe8] sm:$0xff]
    %v150 = vld [vmem:[#allocation5 + $0xf0] sm:$0xff]
    %v151 = vld [vmem:[#allocation5 + $0xf8] sm:$0xff]
    %v152 = vld [vmem:[#allocation5 + $0x100] sm:$0xff]
    %v153 = vld [vmem:[#allocation5 + $0x108] sm:$0xff]
    %v154 = vld [vmem:[#allocation5 + $0x110] sm:$0xff]
    %v155 = vld [vmem:[#allocation5 + $0x118] sm:$0xff]
    %v156 = vld [vmem:[#allocation5 + $0x120] sm:$0xff]
    %v157 = vld [vmem:[#allocation5 + $0x128] sm:$0xff]
    %v158 = vld [vmem:[#allocation5 + $0x130] sm:$0xff]
    %v159 = vld [vmem:[#allocation5 + $0x138] sm:$0xff]
    %v160 = vld [vmem:[#allocation5 + $0x140] sm:$0xff]
    %v161 = vld [vmem:[#allocation5 + $0x148] sm:$0xff]
    %v162 = vld [vmem:[#allocation5 + $0x150] sm:$0xff]
    %v163 = vld [vmem:[#allocation5 + $0x158] sm:$0xff]
    %v164 = vld [vmem:[#allocation5 + $0x160] sm:$0xff]
    %v165 = vld [vmem:[#allocation5 + $0x168] sm:$0xff]
    %v166 = vld [vmem:[#allocation5 + $0x170] sm:$0xff]
    %v167 = vld [vmem:[#allocation5 + $0x178] sm:$0xff]
    %v168 = vld [vmem:[#allocation5 + $0x180] sm:$0xff]
    %v169 = vld [vmem:[#allocation5 + $0x188] sm:$0xff]
    %v170 = vld [vmem:[#allocation7] sm:$0xf]
    %v172 = vperm.slane %v170, 0
    %v173 = vperm.slane %v170, 1
    %v174 = vperm.slane %v170, 2
    %v175 = vperm.slane %v170, 3
    %v230 = vunpack.c.l.b16 %v120
    %v231 = vunpack.c.h.b16 %v120
    %v232 = vunpack.c.l.b16 %v121
    %v233 = vunpack.c.h.b16 %v121
    %v234 = vunpack.c.l.b16 %v122
    %v235 = vunpack.c.h.b16 %v122
    %v236 = vunpack.c.l.b16 %v123
    %v237 = vunpack.c.h.b16 %v123
    %v238 = vunpack.c.l.b16 %v124
    %v239 = vunpack.c.h.b16 %v124
    %v240 = vunpack.c.l.b16 %v125
    %v241 = vunpack.c.h.b16 %v125
    %v242 = vunpack.c.l.b16 %v126
    %v243 = vunpack.c.h.b16 %v126
    %v244 = vunpack.c.l.b16 %v127
    %v245 = vunpack.c.h.b16 %v127
    %v246 = vunpack.c.l.b16 %v128
    %v247 = vunpack.c.h.b16 %v128
    %v248 = vunpack.c.l.b16 %v129
    %v249 = vunpack.c.h.b16 %v129
    %v250 = vunpack.c.l.b16 %v130
    %v251 = vunpack.c.h.b16 %v130
    %v252 = vunpack.c.l.b16 %v131
    %v253 = vunpack.c.h.b16 %v131
    %v254 = vunpack.c.l.b16 %v132
    %v255 = vunpack.c.h.b16 %v132
    %v256 = vunpack.c.l.b16 %v133
    %v257 = vunpack.c.h.b16 %v133
    %v258 = vunpack.c.l.b16 %v134
    %v259 = vunpack.c.h.b16 %v134
    %v260 = vunpack.c.l.b16 %v135
    %v261 = vunpack.c.h.b16 %v135
    %v262 = vunpack.c.l.b16 %v136
    %v263 = vunpack.c.h.b16 %v136
    %v264 = vunpack.c.l.b16 %v137
    %v265 = vunpack.c.h.b16 %v137
    %v266 = vunpack.c.l.b16 %v138
    %v267 = vunpack.c.h.b16 %v138
    %v268 = vunpack.c.l.b16 %v139
    %v269 = vunpack.c.h.b16 %v139
    %v270 = vunpack.c.l.b16 %v140
    %v271 = vunpack.c.h.b16 %v140
    %v272 = vunpack.c.l.b16 %v141
    %v273 = vunpack.c.h.b16 %v141
    %v274 = vunpack.c.l.b16 %v142
    %v275 = vunpack.c.h.b16 %v142
    %v276 = vunpack.c.l.b16 %v143
    %v277 = vunpack.c.h.b16 %v143
    %v278 = vunpack.c.l.b16 %v144
    %v279 = vunpack.c.h.b16 %v144
    %v280 = vunpack.c.l.b16 %v145
    %v281 = vunpack.c.h.b16 %v145
    %v282 = vunpack.c.l.b16 %v146
    %v283 = vunpack.c.h.b16 %v146
    %v284 = vunpack.c.l.b16 %v147
    %v285 = vunpack.c.h.b16 %v147
    %v286 = vunpack.c.l.b16 %v148
    %v287 = vunpack.c.h.b16 %v148
    %v288 = vunpack.c.l.b16 %v149
    %v289 = vunpack.c.h.b16 %v149
    %v290 = vunpack.c.l.b16 %v150
    %v291 = vunpack.c.h.b16 %v150
    %v292 = vunpack.c.l.b16 %v151
    %v293 = vunpack.c.h.b16 %v151
    %v294 = vunpack.c.l.b16 %v152
    %v295 = vunpack.c.h.b16 %v152
    %v296 = vunpack.c.l.b16 %v153
    %v297 = vunpack.c.h.b16 %v153
    %v298 = vunpack.c.l.b16 %v154
    %v299 = vunpack.c.h.b16 %v154
    %v300 = vunpack.c.l.b16 %v155
    %v301 = vunpack.c.h.b16 %v155
    %v302 = vunpack.c.l.b16 %v156
    %v303 = vunpack.c.h.b16 %v156
    %v304 = vunpack.c.l.b16 %v157
    %v305 = vunpack.c.h.b16 %v157
    %v306 = vunpack.c.l.b16 %v158
    %v307 = vunpack.c.h.b16 %v158
    %v308 = vunpack.c.l.b16 %v159
    %v309 = vunpack.c.h.b16 %v159
    %v310 = vunpack.c.l.b16 %v160
    %v311 = vunpack.c.h.b16 %v160
    %v312 = vunpack.c.l.b16 %v161
    %v313 = vunpack.c.h.b16 %v161
    %v314 = vunpack.c.l.b16 %v162
    %v315 = vunpack.c.h.b16 %v162
    %v316 = vunpack.c.l.b16 %v163
    %v317 = vunpack.c.h.b16 %v163
    %v318 = vunpack.c.l.b16 %v164
    %v319 = vunpack.c.h.b16 %v164
    %v320 = vunpack.c.l.b16 %v165
    %v321 = vunpack.c.h.b16 %v165
    %v322 = vunpack.c.l.b16 %v166
    %v323 = vunpack.c.h.b16 %v166
    %v324 = vunpack.c.l.b16 %v167
    %v325 = vunpack.c.h.b16 %v167
    %v326 = vunpack.c.l.b16 %v168
    %v327 = vunpack.c.h.b16 %v168
    %v328 = vunpack.c.l.b16 %v169
    %v329 = vunpack.c.h.b16 %v169
    %v330 = vpack.c.b16 %v234, %v230
    %v331 = vpack.c.b16 %v235, %v231
    %v332 = vpack.c.b16 %v236, %v232
    %v333 = vpack.c.b16 %v237, %v233
    %v334 = vpack.c.b16 %v242, %v238
    %v335 = vpack.c.b16 %v243, %v239
    %v336 = vpack.c.b16 %v244, %v240
    %v337 = vpack.c.b16 %v245, %v241
    %v338 = vpack.c.b16 %v250, %v246
    %v339 = vpack.c.b16 %v251, %v247
    %v340 = vpack.c.b16 %v252, %v248
    %v341 = vpack.c.b16 %v253, %v249
    %v342 = vpack.c.b16 %v258, %v254
    %v343 = vpack.c.b16 %v259, %v255
    %v344 = vpack.c.b16 %v260, %v256
    %v345 = vpack.c.b16 %v261, %v257
    %v346 = vpack.c.b16 %v266, %v262
    %v347 = vpack.c.b16 %v267, %v263
    %v348 = vpack.c.b16 %v268, %v264
    %v349 = vpack.c.b16 %v269, %v265
    %v350 = vpack.c.b16 %v274, %v270
    %v351 = vpack.c.b16 %v275, %v271
    %v352 = vpack.c.b16 %v276, %v272
    %v353 = vpack.c.b16 %v277, %v273
    %v354 = vpack.c.b16 %v282, %v278
    %v355 = vpack.c.b16 %v283, %v279
    %v356 = vpack.c.b16 %v284, %v280
    %v357 = vpack.c.b16 %v285, %v281
    %v358 = vpack.c.b16 %v290, %v286
    %v359 = vpack.c.b16 %v291, %v287
    %v360 = vpack.c.b16 %v292, %v288
    %v361 = vpack.c.b16 %v293, %v289
    %v362 = vpack.c.b16 %v298, %v294
    %v363 = vpack.c.b16 %v299, %v295
    %v364 = vpack.c.b16 %v300, %v296
    %v365 = vpack.c.b16 %v301, %v297
    %v366 = vpack.c.b16 %v306, %v302
    %v367 = vpack.c.b16 %v307, %v303
    %v368 = vpack.c.b16 %v308, %v304
    %v369 = vpack.c.b16 %v309, %v305
    %v370 = vpack.c.b16 %v314, %v310
    %v371 = vpack.c.b16 %v315, %v311
    %v372 = vpack.c.b16 %v316, %v312
    %v373 = vpack.c.b16 %v317, %v313
    %v374 = vpack.c.b16 %v322, %v318
    %v375 = vpack.c.b16 %v323, %v319
    %v376 = vpack.c.b16 %v324, %v320
    %v377 = vpack.c.b16 %v325, %v321
    %v378 = vpack.c.b16 %v326, %v326
    %v379 = vpack.c.b16 %v327, %v327
    %v380 = vpack.c.b16 %v328, %v328
    %v381 = vpack.c.b16 %v329, %v329
    %vm430 = vcmask 588800
    %v432 = vsel %vm430, %v119, 0
    %vm434 = vcmask 1043456
    %v436 = vsel %vm434, %v378, 0
    %v439 = vsel %vm434, %v379, 0
    %v442 = vsel %vm434, %v380, 0
    %v445 = vsel %vm434, %v381, 0
    %447 = vmatpush.bf16.msra.mxu0 %v358
    %448 = vmatpush.bf16.msra.mxu0 %v354
    %449 = vmatpush.bf16.msra.mxu0 %v350
    %450 = vmatpush.bf16.msra.mxu0 %v346
    %451 = vmatpush.bf16.msra.mxu0 %v342
    %452 = vmatpush.bf16.msra.mxu0 %v338
    %453 = vmatpush.bf16.msra.mxu0 %v334
    %454 = vmatpush.bf16.msra.mxu0 %v330
    %455 = vmatmul.bf16.gmra.mxu0 %v118
    %v456 = vpop.f32.mrf.mxu0
    %v457 = vadd.f32 %v172, %v456
    %v458 = vpop.f32.mrf.mxu0
    %459 = vdwg.mxu0
    %460 = vmatpush.bf16.msra.mxu0 0
    %461 = vmatpush.bf16.msra.mxu0 0
    %462 = vmatpush.bf16.msra.mxu0 0
    %463 = vmatpush.bf16.msra.mxu0 %v436
    %464 = vmatpush.bf16.msra.mxu0 %v374
    %465 = vmatpush.bf16.msra.mxu0 %v370
    %466 = vmatpush.bf16.msra.mxu0 %v366
    %467 = vmatpush.bf16.msra.mxu0 %v362
    %468 = vmatmul.bf16.gmra.mxu0 %v432
    %v469 = vpop.f32.mrf.mxu0
    %v470 = vadd.f32 %v457, %v469
    %v471 = vpop.f32.mrf.mxu0
    %472 = vdwg.mxu0
    %473 = vmatpush.bf16.msra.mxu0 %v359
    %474 = vmatpush.bf16.msra.mxu0 %v355
    %475 = vmatpush.bf16.msra.mxu0 %v351
    %476 = vmatpush.bf16.msra.mxu0 %v347
    %477 = vmatpush.bf16.msra.mxu0 %v343
    %478 = vmatpush.bf16.msra.mxu0 %v339
    %479 = vmatpush.bf16.msra.mxu0 %v335
    %480 = vmatpush.bf16.msra.mxu0 %v331
    %481 = vmatmul.bf16.gmra.mxu0 %v118
    %v482 = vpop.f32.mrf.mxu0
    %v483 = vadd.f32 %v173, %v482
    %v484 = vpop.f32.mrf.mxu0
    %485 = vdwg.mxu0
    %486 = vmatpush.bf16.msra.mxu0 0
    %487 = vmatpush.bf16.msra.mxu0 0
    %488 = vmatpush.bf16.msra.mxu0 0
    %489 = vmatpush.bf16.msra.mxu0 %v439
    %490 = vmatpush.bf16.msra.mxu0 %v375
    %491 = vmatpush.bf16.msra.mxu0 %v371
    %492 = vmatpush.bf16.msra.mxu0 %v367
    %493 = vmatpush.bf16.msra.mxu0 %v363
    %494 = vmatmul.bf16.gmra.mxu0 %v432
    %v495 = vpop.f32.mrf.mxu0
    %v496 = vadd.f32 %v483, %v495
    %v497 = vpop.f32.mrf.mxu0
    %498 = vdwg.mxu0
    %499 = vmatpush.bf16.msra.mxu0 %v360
    %500 = vmatpush.bf16.msra.mxu0 %v356
    %501 = vmatpush.bf16.msra.mxu0 %v352
    %502 = vmatpush.bf16.msra.mxu0 %v348
    %503 = vmatpush.bf16.msra.mxu0 %v344
    %504 = vmatpush.bf16.msra.mxu0 %v340
    %505 = vmatpush.bf16.msra.mxu0 %v336
    %506 = vmatpush.bf16.msra.mxu0 %v332
    %507 = vmatmul.bf16.gmra.mxu0 %v118
    %v508 = vpop.f32.mrf.mxu0
    %v509 = vadd.f32 %v174, %v508
    %v510 = vpop.f32.mrf.mxu0
    %511 = vdwg.mxu0
    %512 = vmatpush.bf16.msra.mxu0 0
    %513 = vmatpush.bf16.msra.mxu0 0
    %514 = vmatpush.bf16.msra.mxu0 0
    %515 = vmatpush.bf16.msra.mxu0 %v442
    %516 = vmatpush.bf16.msra.mxu0 %v376
    %517 = vmatpush.bf16.msra.mxu0 %v372
    %518 = vmatpush.bf16.msra.mxu0 %v368
    %519 = vmatpush.bf16.msra.mxu0 %v364
    %520 = vmatmul.bf16.gmra.mxu0 %v432
    %v521 = vpop.f32.mrf.mxu0
    %v522 = vadd.f32 %v509, %v521
    %v523 = vpop.f32.mrf.mxu0
    %524 = vdwg.mxu0
    %525 = vmatpush.bf16.msra.mxu0 %v361
    %526 = vmatpush.bf16.msra.mxu0 %v357
    %527 = vmatpush.bf16.msra.mxu0 %v353
    %528 = vmatpush.bf16.msra.mxu0 %v349
    %529 = vmatpush.bf16.msra.mxu0 %v345
    %530 = vmatpush.bf16.msra.mxu0 %v341
    %531 = vmatpush.bf16.msra.mxu0 %v337
    %532 = vmatpush.bf16.msra.mxu0 %v333
    %533 = vmatmul.bf16.gmra.mxu0 %v118
    %v534 = vpop.f32.mrf.mxu0
    %v535 = vadd.f32 %v175, %v534
    %v536 = vpop.f32.mrf.mxu0
    %537 = vdwg.mxu0
    %538 = vmatpush.bf16.msra.mxu0 0
    %539 = vmatpush.bf16.msra.mxu0 0
    %540 = vmatpush.bf16.msra.mxu0 0
    %541 = vmatpush.bf16.msra.mxu0 %v445
    %542 = vmatpush.bf16.msra.mxu0 %v377
    %543 = vmatpush.bf16.msra.mxu0 %v373
    %544 = vmatpush.bf16.msra.mxu0 %v369
    %545 = vmatpush.bf16.msra.mxu0 %v365
    %546 = vmatmul.bf16.gmra.mxu0 %v432
    %v547 = vpop.f32.mrf.mxu0
    %v548 = vadd.f32 %v535, %v547
    %v549 = vpop.f32.mrf.mxu0
    %550 = vdwg.mxu0
    %v551 = vpack.c.bf16 %v496, %v470
    %v552 = vpack.c.bf16 %v548, %v522
    %v553 = vunpack.c.l.bf16 %v551
    %v554 = vunpack.c.h.bf16 %v551
    %v555 = vunpack.c.l.bf16 %v552
    %v556 = vunpack.c.h.bf16 %v552
    %v557 = vmul.f32 %v553, 0.010009766
    %v558 = vmul.f32 %v554, 0.010009766
    %v559 = vmul.f32 %v555, 0.010009766
    %v560 = vmul.f32 %v556, 0.010009766
    %v561 = vpack.c.bf16 %v558, %v557
    %v562 = vpack.c.bf16 %v560, %v559
    %v563 = vunpack.c.l.bf16 %v561
    %v564 = vunpack.c.h.bf16 %v561
    %v565 = vunpack.c.l.bf16 %v562
    %v566 = vunpack.c.h.bf16 %v562
    %v567 = vmax.f32 %v553, %v563
    %v568 = vmax.f32 %v554, %v564
    %v569 = vmax.f32 %v555, %v565
    %v570 = vmax.f32 %v556, %v566
    %v571 = vpack.c.bf16 %v567, %v567
    %v572 = vpack.c.bf16 %v568, %v568
    %v573 = vpack.c.bf16 %v569, %v569
    %v574 = vpack.c.bf16 %v570, %v570
    %v575 = vld [vmem:[#allocation8] sm:$0xff]
    %v576 = vld [vmem:[#allocation8 + $0x8] sm:$0xff]
    %v577 = vld [vmem:[#allocation8 + $0x10] sm:$0xff]
    %v578 = vld [vmem:[#allocation8 + $0x18] sm:$0xff]
    %v579 = vld [vmem:[#allocation8 + $0x20] sm:$0xff]
    %v580 = vld [vmem:[#allocation8 + $0x28] sm:$0xff]
    %v581 = vld [vmem:[#allocation8 + $0x30] sm:$0xff]
    %v582 = vld [vmem:[#allocation8 + $0x38] sm:$0xff]
    %v583 = vld [vmem:[#allocation8 + $0x40] sm:$0xff]
    %v584 = vld [vmem:[#allocation8 + $0x48] sm:$0xff]
    %v585 = vld [vmem:[#allocation8 + $0x50] sm:$0xff]
    %v586 = vld [vmem:[#allocation8 + $0x58] sm:$0xff]
    %v587 = vld [vmem:[#allocation8 + $0x60] sm:$0xff]
    %v588 = vld [vmem:[#allocation8 + $0x68] sm:$0xff]
    %v589 = vld [vmem:[#allocation8 + $0x70] sm:$0xff]
    %v590 = vld [vmem:[#allocation8 + $0x78] sm:$0xff]
    %v591 = vld [vmem:[#allocation8 + $0x80] sm:$0xff]
    %v592 = vld [vmem:[#allocation8 + $0x88] sm:$0xff]
    %v593 = vld [vmem:[#allocation8 + $0x90] sm:$0xff]
    %v594 = vld [vmem:[#allocation8 + $0x98] sm:$0xff]
    %v595 = vld [vmem:[#allocation8 + $0xa0] sm:$0xff]
    %v596 = vld [vmem:[#allocation8 + $0xa8] sm:$0xff]
    %v597 = vld [vmem:[#allocation8 + $0xb0] sm:$0xff]
    %v598 = vld [vmem:[#allocation8 + $0xb8] sm:$0xff]
    %v599 = vld [vmem:[#allocation8 + $0xc0] sm:$0xff]
    %v600 = vld [vmem:[#allocation8 + $0xc8] sm:$0xff]
    %v601 = vld [vmem:[#allocation8 + $0xd0] sm:$0xff]
    %v602 = vld [vmem:[#allocation8 + $0xd8] sm:$0xff]
    %v603 = vld [vmem:[#allocation8 + $0xe0] sm:$0xff]
    %v604 = vld [vmem:[#allocation8 + $0xe8] sm:$0xff]
    %v605 = vld [vmem:[#allocation8 + $0xf0] sm:$0xff]
    %v606 = vld [vmem:[#allocation8 + $0xf8] sm:$0xff]
    %v607 = vld [vmem:[#allocation8 + $0x100] sm:$0xff]
    %v608 = vld [vmem:[#allocation8 + $0x108] sm:$0xff]
    %v609 = vld [vmem:[#allocation8 + $0x110] sm:$0xff]
    %v610 = vld [vmem:[#allocation8 + $0x118] sm:$0xff]
    %v611 = vld [vmem:[#allocation8 + $0x120] sm:$0xff]
    %v612 = vld [vmem:[#allocation8 + $0x128] sm:$0xff]
    %v613 = vld [vmem:[#allocation8 + $0x130] sm:$0xff]
    %v614 = vld [vmem:[#allocation8 + $0x138] sm:$0xff]
    %v615 = vld [vmem:[#allocation8 + $0x140] sm:$0xff]
    %v616 = vld [vmem:[#allocation8 + $0x148] sm:$0xff]
    %v617 = vld [vmem:[#allocation8 + $0x150] sm:$0xff]
    %v618 = vld [vmem:[#allocation8 + $0x158] sm:$0xff]
    %v619 = vld [vmem:[#allocation8 + $0x160] sm:$0xff]
    %v620 = vld [vmem:[#allocation8 + $0x168] sm:$0xff]
    %v621 = vld [vmem:[#allocation8 + $0x170] sm:$0xff]
    %v622 = vld [vmem:[#allocation8 + $0x178] sm:$0xff]
    %v623 = vld [vmem:[#allocation8 + $0x180] sm:$0xff]
    %v624 = vld [vmem:[#allocation8 + $0x188] sm:$0xff]
    %v625 = vld [vmem:[#allocation8 + $0x190] sm:$0xff]
    %v626 = vld [vmem:[#allocation8 + $0x198] sm:$0xff]
    %v627 = vld [vmem:[#allocation8 + $0x1a0] sm:$0xff]
    %v628 = vld [vmem:[#allocation8 + $0x1a8] sm:$0xff]
    %v629 = vld [vmem:[#allocation8 + $0x1b0] sm:$0xff]
    %v630 = vld [vmem:[#allocation8 + $0x1b8] sm:$0xff]
    %v631 = vld [vmem:[#allocation8 + $0x1c0] sm:$0xff]
    %v632 = vld [vmem:[#allocation8 + $0x1c8] sm:$0xff]
    %v633 = vld [vmem:[#allocation8 + $0x1d0] sm:$0xff]
    %v634 = vld [vmem:[#allocation8 + $0x1d8] sm:$0xff]
    %v635 = vld [vmem:[#allocation8 + $0x1e0] sm:$0xff]
    %v636 = vld [vmem:[#allocation8 + $0x1e8] sm:$0xff]
    %v637 = vld [vmem:[#allocation8 + $0x1f0] sm:$0xff]
    %v638 = vld [vmem:[#allocation8 + $0x1f8] sm:$0xff]
    %v639 = vld [vmem:[#allocation10] sm:$0x3]
    %v641 = vperm.slane %v639, 0
    %v642 = vperm.slane %v639, 1
    %v709 = vunpack.c.l.b16 %v575
    %v710 = vunpack.c.h.b16 %v575
    %v711 = vunpack.c.l.b16 %v576
    %v712 = vunpack.c.h.b16 %v576
    %v713 = vunpack.c.l.b16 %v577
    %v714 = vunpack.c.h.b16 %v577
    %v715 = vunpack.c.l.b16 %v578
    %v716 = vunpack.c.h.b16 %v578
    %v717 = vunpack.c.l.b16 %v579
    %v718 = vunpack.c.h.b16 %v579
    %v719 = vunpack.c.l.b16 %v580
    %v720 = vunpack.c.h.b16 %v580
    %v721 = vunpack.c.l.b16 %v581
    %v722 = vunpack.c.h.b16 %v581
    %v723 = vunpack.c.l.b16 %v582
    %v724 = vunpack.c.h.b16 %v582
    %v725 = vunpack.c.l.b16 %v583
    %v726 = vunpack.c.h.b16 %v583
    %v727 = vunpack.c.l.b16 %v584
    %v728 = vunpack.c.h.b16 %v584
    %v729 = vunpack.c.l.b16 %v585
    %v730 = vunpack.c.h.b16 %v585
    %v731 = vunpack.c.l.b16 %v586
    %v732 = vunpack.c.h.b16 %v586
    %v733 = vunpack.c.l.b16 %v587
    %v734 = vunpack.c.h.b16 %v587
    %v735 = vunpack.c.l.b16 %v588
    %v736 = vunpack.c.h.b16 %v588
    %v737 = vunpack.c.l.b16 %v589
    %v738 = vunpack.c.h.b16 %v589
    %v739 = vunpack.c.l.b16 %v590
    %v740 = vunpack.c.h.b16 %v590
    %v741 = vunpack.c.l.b16 %v591
    %v742 = vunpack.c.h.b16 %v591
    %v743 = vunpack.c.l.b16 %v592
    %v744 = vunpack.c.h.b16 %v592
    %v745 = vunpack.c.l.b16 %v593
    %v746 = vunpack.c.h.b16 %v593
    %v747 = vunpack.c.l.b16 %v594
    %v748 = vunpack.c.h.b16 %v594
    %v749 = vunpack.c.l.b16 %v595
    %v750 = vunpack.c.h.b16 %v595
    %v751 = vunpack.c.l.b16 %v596
    %v752 = vunpack.c.h.b16 %v596
    %v753 = vunpack.c.l.b16 %v597
    %v754 = vunpack.c.h.b16 %v597
    %v755 = vunpack.c.l.b16 %v598
    %v756 = vunpack.c.h.b16 %v598
    %v757 = vunpack.c.l.b16 %v599
    %v758 = vunpack.c.h.b16 %v599
    %v759 = vunpack.c.l.b16 %v600
    %v760 = vunpack.c.h.b16 %v600
    %v761 = vunpack.c.l.b16 %v601
    %v762 = vunpack.c.h.b16 %v601
    %v763 = vunpack.c.l.b16 %v602
    %v764 = vunpack.c.h.b16 %v602
    %v765 = vunpack.c.l.b16 %v603
    %v766 = vunpack.c.h.b16 %v603
    %v767 = vunpack.c.l.b16 %v604
    %v768 = vunpack.c.h.b16 %v604
    %v769 = vunpack.c.l.b16 %v605
    %v770 = vunpack.c.h.b16 %v605
    %v771 = vunpack.c.l.b16 %v606
    %v772 = vunpack.c.h.b16 %v606
    %v773 = vunpack.c.l.b16 %v607
    %v774 = vunpack.c.h.b16 %v607
    %v775 = vunpack.c.l.b16 %v608
    %v776 = vunpack.c.h.b16 %v608
    %v777 = vunpack.c.l.b16 %v609
    %v778 = vunpack.c.h.b16 %v609
    %v779 = vunpack.c.l.b16 %v610
    %v780 = vunpack.c.h.b16 %v610
    %v781 = vunpack.c.l.b16 %v611
    %v782 = vunpack.c.h.b16 %v611
    %v783 = vunpack.c.l.b16 %v612
    %v784 = vunpack.c.h.b16 %v612
    %v785 = vunpack.c.l.b16 %v613
    %v786 = vunpack.c.h.b16 %v613
    %v787 = vunpack.c.l.b16 %v614
    %v788 = vunpack.c.h.b16 %v614
    %v789 = vunpack.c.l.b16 %v615
    %v790 = vunpack.c.h.b16 %v615
    %v791 = vunpack.c.l.b16 %v616
    %v792 = vunpack.c.h.b16 %v616
    %v793 = vunpack.c.l.b16 %v617
    %v794 = vunpack.c.h.b16 %v617
    %v795 = vunpack.c.l.b16 %v618
    %v796 = vunpack.c.h.b16 %v618
    %v797 = vunpack.c.l.b16 %v619
    %v798 = vunpack.c.h.b16 %v619
    %v799 = vunpack.c.l.b16 %v620
    %v800 = vunpack.c.h.b16 %v620
    %v801 = vunpack.c.l.b16 %v621
    %v802 = vunpack.c.h.b16 %v621
    %v803 = vunpack.c.l.b16 %v622
    %v804 = vunpack.c.h.b16 %v622
    %v805 = vunpack.c.l.b16 %v623
    %v806 = vunpack.c.h.b16 %v623
    %v807 = vunpack.c.l.b16 %v624
    %v808 = vunpack.c.h.b16 %v624
    %v809 = vunpack.c.l.b16 %v625
    %v810 = vunpack.c.h.b16 %v625
    %v811 = vunpack.c.l.b16 %v626
    %v812 = vunpack.c.h.b16 %v626
    %v813 = vunpack.c.l.b16 %v627
    %v814 = vunpack.c.h.b16 %v627
    %v815 = vunpack.c.l.b16 %v628
    %v816 = vunpack.c.h.b16 %v628
    %v817 = vunpack.c.l.b16 %v629
    %v818 = vunpack.c.h.b16 %v629
    %v819 = vunpack.c.l.b16 %v630
    %v820 = vunpack.c.h.b16 %v630
    %v821 = vunpack.c.l.b16 %v631
    %v822 = vunpack.c.h.b16 %v631
    %v823 = vunpack.c.l.b16 %v632
    %v824 = vunpack.c.h.b16 %v632
    %v825 = vunpack.c.l.b16 %v633
    %v826 = vunpack.c.h.b16 %v633
    %v827 = vunpack.c.l.b16 %v634
    %v828 = vunpack.c.h.b16 %v634
    %v829 = vunpack.c.l.b16 %v635
    %v830 = vunpack.c.h.b16 %v635
    %v831 = vunpack.c.l.b16 %v636
    %v832 = vunpack.c.h.b16 %v636
    %v833 = vunpack.c.l.b16 %v637
    %v834 = vunpack.c.h.b16 %v637
    %v835 = vunpack.c.l.b16 %v638
    %v836 = vunpack.c.h.b16 %v638
    %v837 = vpack.c.b16 %v711, %v709
    %v838 = vpack.c.b16 %v712, %v710
    %v839 = vpack.c.b16 %v715, %v713
    %v840 = vpack.c.b16 %v716, %v714
    %v841 = vpack.c.b16 %v719, %v717
    %v842 = vpack.c.b16 %v720, %v718
    %v843 = vpack.c.b16 %v723, %v721
    %v844 = vpack.c.b16 %v724, %v722
    %v845 = vpack.c.b16 %v727, %v725
    %v846 = vpack.c.b16 %v728, %v726
    %v847 = vpack.c.b16 %v731, %v729
    %v848 = vpack.c.b16 %v732, %v730
    %v849 = vpack.c.b16 %v735, %v733
    %v850 = vpack.c.b16 %v736, %v734
    %v851 = vpack.c.b16 %v739, %v737
    %v852 = vpack.c.b16 %v740, %v738
    %v853 = vpack.c.b16 %v743, %v741
    %v854 = vpack.c.b16 %v744, %v742
    %v855 = vpack.c.b16 %v747, %v745
    %v856 = vpack.c.b16 %v748, %v746
    %v857 = vpack.c.b16 %v751, %v749
    %v858 = vpack.c.b16 %v752, %v750
    %v859 = vpack.c.b16 %v755, %v753
    %v860 = vpack.c.b16 %v756, %v754
    %v861 = vpack.c.b16 %v759, %v757
    %v862 = vpack.c.b16 %v760, %v758
    %v863 = vpack.c.b16 %v763, %v761
    %v864 = vpack.c.b16 %v764, %v762
    %v865 = vpack.c.b16 %v767, %v765
    %v866 = vpack.c.b16 %v768, %v766
    %v867 = vpack.c.b16 %v771, %v769
    %v868 = vpack.c.b16 %v772, %v770
    %v869 = vpack.c.b16 %v775, %v773
    %v870 = vpack.c.b16 %v776, %v774
    %v871 = vpack.c.b16 %v779, %v777
    %v872 = vpack.c.b16 %v780, %v778
    %v873 = vpack.c.b16 %v783, %v781
    %v874 = vpack.c.b16 %v784, %v782
    %v875 = vpack.c.b16 %v787, %v785
    %v876 = vpack.c.b16 %v788, %v786
    %v877 = vpack.c.b16 %v791, %v789
    %v878 = vpack.c.b16 %v792, %v790
    %v879 = vpack.c.b16 %v795, %v793
    %v880 = vpack.c.b16 %v796, %v794
    %v881 = vpack.c.b16 %v799, %v797
    %v882 = vpack.c.b16 %v800, %v798
    %v883 = vpack.c.b16 %v803, %v801
    %v884 = vpack.c.b16 %v804, %v802
    %v885 = vpack.c.b16 %v807, %v805
    %v886 = vpack.c.b16 %v808, %v806
    %v887 = vpack.c.b16 %v811, %v809
    %v888 = vpack.c.b16 %v812, %v810
    %v889 = vpack.c.b16 %v815, %v813
    %v890 = vpack.c.b16 %v816, %v814
    %v891 = vpack.c.b16 %v819, %v817
    %v892 = vpack.c.b16 %v820, %v818
    %v893 = vpack.c.b16 %v823, %v821
    %v894 = vpack.c.b16 %v824, %v822
    %v895 = vpack.c.b16 %v827, %v825
    %v896 = vpack.c.b16 %v828, %v826
    %v897 = vpack.c.b16 %v831, %v829
    %v898 = vpack.c.b16 %v832, %v830
    %v899 = vpack.c.b16 %v835, %v833
    %v900 = vpack.c.b16 %v836, %v834
    %965 = vmatpush.bf16.msra.mxu0 %v851
    %966 = vmatpush.bf16.msra.mxu0 %v849
    %967 = vmatpush.bf16.msra.mxu0 %v847
    %968 = vmatpush.bf16.msra.mxu0 %v845
    %969 = vmatpush.bf16.msra.mxu0 %v843
    %970 = vmatpush.bf16.msra.mxu0 %v841
    %971 = vmatpush.bf16.msra.mxu0 %v839
    %972 = vmatpush.bf16.msra.mxu0 %v837
    %973 = vmatmul.bf16.gmra.mxu0 %v571
    %v974 = vpop.f32.mrf.mxu0
    %v975 = vadd.f32 %v641, %v974
    %v976 = vpop.f32.mrf.mxu0
    %977 = vdwg.mxu0
    %978 = vmatpush.bf16.msra.mxu0 %v867
    %979 = vmatpush.bf16.msra.mxu0 %v865
    %980 = vmatpush.bf16.msra.mxu0 %v863
    %981 = vmatpush.bf16.msra.mxu0 %v861
    %982 = vmatpush.bf16.msra.mxu0 %v859
    %983 = vmatpush.bf16.msra.mxu0 %v857
    %984 = vmatpush.bf16.msra.mxu0 %v855
    %985 = vmatpush.bf16.msra.mxu0 %v853
    %986 = vmatmul.bf16.gmra.mxu0 %v572
    %v987 = vpop.f32.mrf.mxu0
    %v988 = vadd.f32 %v975, %v987
    %v989 = vpop.f32.mrf.mxu0
    %990 = vdwg.mxu0
    %991 = vmatpush.bf16.msra.mxu0 %v883
    %992 = vmatpush.bf16.msra.mxu0 %v881
    %993 = vmatpush.bf16.msra.mxu0 %v879
    %994 = vmatpush.bf16.msra.mxu0 %v877
    %995 = vmatpush.bf16.msra.mxu0 %v875
    %996 = vmatpush.bf16.msra.mxu0 %v873
    %997 = vmatpush.bf16.msra.mxu0 %v871
    %998 = vmatpush.bf16.msra.mxu0 %v869
    %999 = vmatmul.bf16.gmra.mxu0 %v573
    %v1000 = vpop.f32.mrf.mxu0
    %v1001 = vadd.f32 %v988, %v1000
    %v1002 = vpop.f32.mrf.mxu0
    %1003 = vdwg.mxu0
    %1004 = vmatpush.bf16.msra.mxu0 %v899
    %1005 = vmatpush.bf16.msra.mxu0 %v897
    %1006 = vmatpush.bf16.msra.mxu0 %v895
    %1007 = vmatpush.bf16.msra.mxu0 %v893
    %1008 = vmatpush.bf16.msra.mxu0 %v891
    %1009 = vmatpush.bf16.msra.mxu0 %v889
    %1010 = vmatpush.bf16.msra.mxu0 %v887
    %1011 = vmatpush.bf16.msra.mxu0 %v885
    %1012 = vmatmul.bf16.gmra.mxu0 %v574
    %v1013 = vpop.f32.mrf.mxu0
    %v1014 = vadd.f32 %v1001, %v1013
    %v1015 = vpop.f32.mrf.mxu0
    %1016 = vdwg.mxu0
    %1017 = vmatpush.bf16.msra.mxu0 %v852
    %1018 = vmatpush.bf16.msra.mxu0 %v850
    %1019 = vmatpush.bf16.msra.mxu0 %v848
    %1020 = vmatpush.bf16.msra.mxu0 %v846
    %1021 = vmatpush.bf16.msra.mxu0 %v844
    %1022 = vmatpush.bf16.msra.mxu0 %v842
    %1023 = vmatpush.bf16.msra.mxu0 %v840
    %1024 = vmatpush.bf16.msra.mxu0 %v838
    %1025 = vmatmul.bf16.gmra.mxu0 %v571
    %v1026 = vpop.f32.mrf.mxu0
    %v1027 = vadd.f32 %v642, %v1026
    %v1028 = vpop.f32.mrf.mxu0
    %1029 = vdwg.mxu0
    %1030 = vmatpush.bf16.msra.mxu0 %v868
    %1031 = vmatpush.bf16.msra.mxu0 %v866
    %1032 = vmatpush.bf16.msra.mxu0 %v864
    %1033 = vmatpush.bf16.msra.mxu0 %v862
    %1034 = vmatpush.bf16.msra.mxu0 %v860
    %1035 = vmatpush.bf16.msra.mxu0 %v858
    %1036 = vmatpush.bf16.msra.mxu0 %v856
    %1037 = vmatpush.bf16.msra.mxu0 %v854
    %1038 = vmatmul.bf16.gmra.mxu0 %v572
    %v1039 = vpop.f32.mrf.mxu0
    %v1040 = vadd.f32 %v1027, %v1039
    %v1041 = vpop.f32.mrf.mxu0
    %1042 = vdwg.mxu0
    %1043 = vmatpush.bf16.msra.mxu0 %v884
    %1044 = vmatpush.bf16.msra.mxu0 %v882
    %1045 = vmatpush.bf16.msra.mxu0 %v880
    %1046 = vmatpush.bf16.msra.mxu0 %v878
    %1047 = vmatpush.bf16.msra.mxu0 %v876
    %1048 = vmatpush.bf16.msra.mxu0 %v874
    %1049 = vmatpush.bf16.msra.mxu0 %v872
    %1050 = vmatpush.bf16.msra.mxu0 %v870
    %1051 = vmatmul.bf16.gmra.mxu0 %v573
    %v1052 = vpop.f32.mrf.mxu0
    %v1053 = vadd.f32 %v1040, %v1052
    %v1054 = vpop.f32.mrf.mxu0
    %1055 = vdwg.mxu0
    %1056 = vmatpush.bf16.msra.mxu0 %v900
    %1057 = vmatpush.bf16.msra.mxu0 %v898
    %1058 = vmatpush.bf16.msra.mxu0 %v896
    %1059 = vmatpush.bf16.msra.mxu0 %v894
    %1060 = vmatpush.bf16.msra.mxu0 %v892
    %1061 = vmatpush.bf16.msra.mxu0 %v890
    %1062 = vmatpush.bf16.msra.mxu0 %v888
    %1063 = vmatpush.bf16.msra.mxu0 %v886
    %1064 = vmatmul.bf16.gmra.mxu0 %v574
    %v1065 = vpop.f32.mrf.mxu0
    %v1066 = vadd.f32 %v1053, %v1065
    %v1067 = vpop.f32.mrf.mxu0
    %1068 = vdwg.mxu0
    %v1069 = vpack.c.bf16 %v1066, %v1014
    %v1070 = vunpack.c.l.bf16 %v1069
    %v1071 = vunpack.c.h.bf16 %v1069
    %v1072 = vmul.f32 %v1070, 0.010009766
    %v1073 = vmul.f32 %v1071, 0.010009766
    %v1074 = vpack.c.bf16 %v1073, %v1072
    %v1075 = vunpack.c.l.bf16 %v1074
    %v1076 = vunpack.c.h.bf16 %v1074
    %v1077 = vmax.f32 %v1070, %v1075
    %v1078 = vmax.f32 %v1071, %v1076
    %v1079 = vpack.c.bf16 %v1077, %v1077
    %v1080 = vpack.c.bf16 %v1078, %v1078
    %v1081 = vld [vmem:[#allocation11] sm:$0xf]
    %v1082 = vld [vmem:[#allocation11 + $0x4] sm:$0xf]
    %v1083 = vld [vmem:[#allocation11 + $0x8] sm:$0xf]
    %v1084 = vld [vmem:[#allocation11 + $0xc] sm:$0xf]
    %v1085 = vld [vmem:[#allocation11 + $0x10] sm:$0xf]
    %v1086 = vld [vmem:[#allocation11 + $0x14] sm:$0xf]
    %v1087 = vld [vmem:[#allocation11 + $0x18] sm:$0xf]
    %v1088 = vld [vmem:[#allocation11 + $0x1c] sm:$0xf]
    %v1089 = vld [vmem:[#allocation11 + $0x20] sm:$0xf]
    %v1090 = vld [vmem:[#allocation11 + $0x24] sm:$0xf]
    %v1091 = vld [vmem:[#allocation11 + $0x28] sm:$0xf]
    %v1092 = vld [vmem:[#allocation11 + $0x2c] sm:$0xf]
    %v1093 = vld [vmem:[#allocation11 + $0x30] sm:$0xf]
    %v1094 = vld [vmem:[#allocation11 + $0x34] sm:$0xf]
    %v1095 = vld [vmem:[#allocation11 + $0x38] sm:$0xf]
    %v1096 = vld [vmem:[#allocation11 + $0x3c] sm:$0xf]
    %v1097 = vld [vmem:[#allocation11 + $0x40] sm:$0xf]
    %v1098 = vld [vmem:[#allocation11 + $0x44] sm:$0xf]
    %v1099 = vld [vmem:[#allocation11 + $0x48] sm:$0xf]
    %v1100 = vld [vmem:[#allocation11 + $0x4c] sm:$0xf]
    %v1101 = vld [vmem:[#allocation11 + $0x50] sm:$0xf]
    %v1102 = vld [vmem:[#allocation11 + $0x54] sm:$0xf]
    %v1103 = vld [vmem:[#allocation11 + $0x58] sm:$0xf]
    %v1104 = vld [vmem:[#allocation11 + $0x5c] sm:$0xf]
    %v1105 = vld [vmem:[#allocation11 + $0x60] sm:$0xf]
    %v1106 = vld [vmem:[#allocation11 + $0x64] sm:$0xf]
    %v1107 = vld [vmem:[#allocation11 + $0x68] sm:$0xf]
    %v1108 = vld [vmem:[#allocation11 + $0x6c] sm:$0xf]
    %v1109 = vld [vmem:[#allocation11 + $0x70] sm:$0xf]
    %v1110 = vld [vmem:[#allocation11 + $0x74] sm:$0xf]
    %v1111 = vld [vmem:[#allocation11 + $0x78] sm:$0xf]
    %v1112 = vld [vmem:[#allocation11 + $0x7c] sm:$0xf]
    %v1113 = vld [vmem:[%s6] sm:$0x1]
    %v1115 = vperm.slane %v1113, 0
    %v1149 = vunpack.c.l.b16 %v1081
    %v1150 = vunpack.c.l.b16 %v1082
    %v1151 = vunpack.c.l.b16 %v1083
    %v1152 = vunpack.c.l.b16 %v1084
    %v1153 = vunpack.c.l.b16 %v1085
    %v1154 = vunpack.c.l.b16 %v1086
    %v1155 = vunpack.c.l.b16 %v1087
    %v1156 = vunpack.c.l.b16 %v1088
    %v1157 = vunpack.c.l.b16 %v1089
    %v1158 = vunpack.c.l.b16 %v1090
    %v1159 = vunpack.c.l.b16 %v1091
    %v1160 = vunpack.c.l.b16 %v1092
    %v1161 = vunpack.c.l.b16 %v1093
    %v1162 = vunpack.c.l.b16 %v1094
    %v1163 = vunpack.c.l.b16 %v1095
    %v1164 = vunpack.c.l.b16 %v1096
    %v1165 = vunpack.c.l.b16 %v1097
    %v1166 = vunpack.c.l.b16 %v1098
    %v1167 = vunpack.c.l.b16 %v1099
    %v1168 = vunpack.c.l.b16 %v1100
    %v1169 = vunpack.c.l.b16 %v1101
    %v1170 = vunpack.c.l.b16 %v1102
    %v1171 = vunpack.c.l.b16 %v1103
    %v1172 = vunpack.c.l.b16 %v1104
    %v1173 = vunpack.c.l.b16 %v1105
    %v1174 = vunpack.c.l.b16 %v1106
    %v1175 = vunpack.c.l.b16 %v1107
    %v1176 = vunpack.c.l.b16 %v1108
    %v1177 = vunpack.c.l.b16 %v1109
    %v1178 = vunpack.c.l.b16 %v1110
    %v1179 = vunpack.c.l.b16 %v1111
    %v1180 = vunpack.c.l.b16 %v1112
    %v1181 = vpack.c.b16 %v1150, %v1149
    %v1182 = vpack.c.b16 %v1152, %v1151
    %v1183 = vpack.c.b16 %v1154, %v1153
    %v1184 = vpack.c.b16 %v1156, %v1155
    %v1185 = vpack.c.b16 %v1158, %v1157
    %v1186 = vpack.c.b16 %v1160, %v1159
    %v1187 = vpack.c.b16 %v1162, %v1161
    %v1188 = vpack.c.b16 %v1164, %v1163
    %v1189 = vpack.c.b16 %v1166, %v1165
    %v1190 = vpack.c.b16 %v1168, %v1167
    %v1191 = vpack.c.b16 %v1170, %v1169
    %v1192 = vpack.c.b16 %v1172, %v1171
    %v1193 = vpack.c.b16 %v1174, %v1173
    %v1194 = vpack.c.b16 %v1176, %v1175
    %v1195 = vpack.c.b16 %v1178, %v1177
    %v1196 = vpack.c.b16 %v1180, %v1179
    %1213 = vmatpush.bf16.msra.mxu0 %v1188
    %1214 = vmatpush.bf16.msra.mxu0 %v1187
    %1215 = vmatpush.bf16.msra.mxu0 %v1186
    %1216 = vmatpush.bf16.msra.mxu0 %v1185
    %1217 = vmatpush.bf16.msra.mxu0 %v1184
    %1218 = vmatpush.bf16.msra.mxu0 %v1183
    %1219 = vmatpush.bf16.msra.mxu0 %v1182
    %1220 = vmatpush.bf16.msra.mxu0 %v1181
    %1221 = vmatmul.bf16.gmra.mxu0 %v1079
    %v1222 = vpop.f32.mrf.mxu0
    %v1223 = vadd.f32 %v1115, %v1222
    %v1224 = vpop.f32.mrf.mxu0
    %1225 = vdwg.mxu0
    %1226 = vmatpush.bf16.msra.mxu0 %v1196
    %1227 = vmatpush.bf16.msra.mxu0 %v1195
    %1228 = vmatpush.bf16.msra.mxu0 %v1194
    %1229 = vmatpush.bf16.msra.mxu0 %v1193
    %1230 = vmatpush.bf16.msra.mxu0 %v1192
    %1231 = vmatpush.bf16.msra.mxu0 %v1191
    %1232 = vmatpush.bf16.msra.mxu0 %v1190
    %1233 = vmatpush.bf16.msra.mxu0 %v1189
    %1234 = vmatmul.bf16.gmra.mxu0 %v1080
    %v1235 = vpop.f32.mrf.mxu0
    %v1236 = vadd.f32 %v1223, %v1235
    %v1237 = vpop.f32.mrf.mxu0
    %1238 = vdwg.mxu0
    %v1239 = vmul.f32 %v1236, 0.01
    %v1240 = vmax.f32 %v1236, %v1239
    %1241 = vst [vmem:[#allocation13] sm:$0xff] %v1240
    // Predicated region
    $region54: #{mlp_200.1} parent=1 // pred_check
      _
    $region55: #{mlp_200.1} parent=1 // pred_check_branch
      %1243 = sbr.rel (0) target = $region57
    $region56: #{mlp_200.1} parent=1 // pred_region
      %1245 = vsyncadd [#allocation4], 0
      %s1247 = sshll.u32 [#allocation13], 4
      %s1248 = int_to_ptr.vmem [resolvable:$true] %s1247
      %s1249 = sshll.u32 %s7, 4
      %s1250 = int_to_ptr.hbm [resolvable:$true] %s1249
      %1252 = dma.vmem_to_hbm [thread:$0]  %s1248, 128, %s1250, [#allocation4]
    $region57: #{mlp_200.1} parent=1 // pred_fallthru
      _
    // Predicated region
    $region58: #{mlp_200.1} parent=1 // pred_check
      _
    $region59: #{mlp_200.1} parent=1 // pred_check_branch
      %1254 = sbr.rel (0) target = $region61
    $region60: #{mlp_200.1} parent=1 // pred_region
      %1256 = dma.done [#allocation4], 128
    $region61: #{mlp_200.1} parent=1 // pred_fallthru
      _
    %1257 = vsyncpa [#allocation3], 1
    %1258 = vsyncpa [#allocation6], 1
    %1259 = vsyncpa [#allocation9], 1
    %1260 = vsyncpa [#allocation12], 1
    %1261 = vsyncpa [#allocation4], 1

</llo_original>
